<compile_context>
chip_gen: v6e
topology: v6e:2x2x1
jax: 0.10.0
libtpu: 0.0.40
codegen_flags: <defaults>
</compile_context>

<pallas_src>
import jax
import jax.numpy as jnp
from jax.experimental import pallas as pl
from jax.experimental.pallas import tpu as pltpu


def _gsinorm_kernel(x_ref, scale_ref, bias_ref, o_ref):
    x = x_ref[...]
    # Straight-through quantization: forward value is q/255, q = clip(round(255*x), 0, 255).
    q = jnp.clip(jnp.round(x * 255.0), 0.0, 255.0)
    # 1/255 is folded into scale (= 1/(255*std)); normalization is a single FMA.
    # sin(510*pi*(q/255) + pi) == sin(pi*(2k+1)) == 0 exactly, so it is omitted.
    o_ref[...] = (q * scale_ref[...] + bias_ref[...]).astype(o_ref.dtype)


def _choose_tiles(R, HW, target_block_bytes):
    itemsize = 4  # f32 input
    # Lane (last) dim: full extent when an (8, HW) slab fits the target; otherwise a
    # 128-aligned chunk (works for any HW; trailing partial block is masked by Pallas).
    if 8 * HW * itemsize <= target_block_bytes:
        bc = HW
    else:
        bc = max(128, (target_block_bytes // (8 * itemsize)) // 128 * 128)
    # Sublane (row) dim: as many rows as fit, multiple of 8 unless it spans all of R.
    rows_fit = max(1, target_block_bytes // (bc * itemsize))
    if rows_fit >= R:
        br = R
    else:
        br = max(8, (rows_fit // 8) * 8)
        if br >= R:
            br = R

    # Never collapse medium/large inputs to a single-block grid: v7x has two TensorCores
    # and the BlockSpec pipeline needs >= 2 steps to overlap DMA with compute.
    # Split the row axis first (keeps the output block lane-dense), else the lane axis.
    total_bytes = R * HW * itemsize
    if total_bytes > 512 * 1024 and pl.cdiv(R, br) * pl.cdiv(HW, bc) < 2:
        half_r = max(8, (((R + 1) // 2) // 8) * 8)
        half_c = max(128, ((((HW + 1) // 2) + 127) // 128) * 128)
        if half_r < R:
            br = half_r
        elif half_c < HW:
            bc = half_c
    return br, bc


def add_gsinorm(x, mean, std, *, target_block_bytes=4 * 1024 * 1024, out_dtype=None):
    """x: (N, C, H, W) f32; mean/std: (1, C, 1, 1) f32. Returns (N, C, H, W)."""
    N, C, H, W = x.shape
    R, HW = N * C, H * W
    x2 = x.reshape(R, HW)
    # Output stays f32 to match the PyTorch module; pass out_dtype=jnp.bfloat16 to cut
    # write traffic ~25% if the downstream Omodel tolerates it (values have 256 levels).
    out_dtype = x.dtype if out_dtype is None else out_dtype

    # Per-row scale/bias so the kernel does one FMA: y = q * (1/(255*std)) + (-mean/std).
    scale_c = (1.0 / (255.0 * std)).reshape(C).astype(jnp.float32)
    bias_c = (-mean / std).reshape(C).astype(jnp.float32)
    scale = jnp.tile(scale_c, N).reshape(R, 1)
    bias = jnp.tile(bias_c, N).reshape(R, 1)

    br, bc = _choose_tiles(R, HW, target_block_bytes)
    grid = (pl.cdiv(R, br), pl.cdiv(HW, bc))  # lane-block axis innermost: scale/bias stay resident

    out2 = pl.pallas_call(
        _gsinorm_kernel,
        out_shape=jax.ShapeDtypeStruct((R, HW), out_dtype),
        grid_spec=pltpu.PrefetchScalarGridSpec(
            num_scalar_prefetch=0,
            grid=grid,
            in_specs=[
                pl.BlockSpec((br, bc), lambda i, j: (i, j)),
                pl.BlockSpec((br, 1), lambda i, j: (i, 0)),
                pl.BlockSpec((br, 1), lambda i, j: (i, 0)),
            ],
            out_specs=pl.BlockSpec((br, bc), lambda i, j: (i, j)),
        ),
        compiler_params=pltpu.CompilerParams(
            dimension_semantics=("parallel", "parallel"),
            vmem_limit_bytes=40 * 1024 * 1024,
        ),
    )(x2, scale, bias)
    return out2.reshape(N, C, H, W)


def omodel(x):
    # TODO(synk): wrapped Omodel is unspecified in the reference module; identity.
    return x


def add_gsinorm_forward(x, mean, std):
    # TODO(synk): forward-only; a custom_vjp (straight-through estimator) is needed for training.
    return omodel(add_gsinorm(x, mean, std))


if __name__ == "__main__":
    # Deterministic parameter init (matches nn.Module __init__).
    mean = jnp.array([0.485, 0.456, 0.406], dtype=jnp.float32).reshape(1, 3, 1, 1)
    std = jnp.array([0.229, 0.224, 0.225], dtype=jnp.float32).reshape(1, 3, 1, 1)

    # Small deterministic input, NCHW with 3 channels (required by mean/std).
    key = jax.random.PRNGKey(0)
    x = jax.random.uniform(key, (2, 3, 16, 16), dtype=jnp.float32)

    out = add_gsinorm_forward(x, mean, std)
    jax.block_until_ready(out)

    # Pure-JAX reference of the same forward math (sin term is exactly zero for the
    # quantized value: its argument is pi*(2k+1) with integer k).
    x_t = jnp.clip(jnp.round(x * 255.0), 0.0, 255.0) / 255.0
    ref = (x_t - mean) / std
    assert out.shape == x.shape
    assert jnp.allclose(out, ref, atol=2e-5, rtol=1e-5), "mismatch vs reference"

    print("KERNEL_OK")
</pallas_src>

<mosaic_0001>
module attributes {stable_mosaic.version = 11 : i64} {
  func.func @_gsinorm_kernel(%arg0: i32, %arg1: i32, %arg2: memref<6x256xf32, #tpu.memory_space<vmem>>, %arg3: memref<6x1xf32, #tpu.memory_space<vmem>>, %arg4: memref<6x1xf32, #tpu.memory_space<vmem>>, %arg5: memref<6x256xf32, #tpu.memory_space<vmem>>) attributes {dimension_semantics = [#tpu.dimension_semantics<parallel>, #tpu.dimension_semantics<parallel>], iteration_bounds = array<i64: 1, 1>, scalar_prefetch = 0 : i64, scratch_operands = 0 : i64, tpu.core_type = #tpu.core_type<tc>, window_params = [{transform_indices = @transform_0, window_bounds = array<i64: 6, 256>}, {transform_indices = @transform_1, window_bounds = array<i64: 6, 1>}, {transform_indices = @transform_2, window_bounds = array<i64: 6, 1>}, {transform_indices = @transform_3, window_bounds = array<i64: 6, 256>}]} {
    %c0 = arith.constant 0 : index
    %c0_0 = arith.constant 0 : index
    %0 = vector.load %arg2[%c0, %c0_0] : memref<6x256xf32, #tpu.memory_space<vmem>>, vector<6x256xf32>
    %cst = arith.constant 2.550000e+02 : f32
    %1 = vector.broadcast %cst : f32 to vector<6x256xf32>
    %2 = arith.mulf %0, %1 : vector<6x256xf32>
    %3 = math.roundeven %2 : vector<6x256xf32>
    %cst_1 = arith.constant 0.000000e+00 : f32
    %cst_2 = arith.constant 2.550000e+02 : f32
    %4 = vector.broadcast %cst_1 : f32 to vector<6x256xf32>
    %5 = arith.maximumf %4, %3 : vector<6x256xf32>
    %6 = vector.broadcast %cst_2 : f32 to vector<6x256xf32>
    %7 = arith.minimumf %6, %5 : vector<6x256xf32>
    %c0_3 = arith.constant 0 : index
    %c0_4 = arith.constant 0 : index
    %8 = vector.load %arg3[%c0_3, %c0_4] : memref<6x1xf32, #tpu.memory_space<vmem>>, vector<6x1xf32>
    %9 = vector.broadcast %8 : vector<6x1xf32> to vector<6x256xf32>
    %10 = arith.mulf %7, %9 : vector<6x256xf32>
    %c0_5 = arith.constant 0 : index
    %c0_6 = arith.constant 0 : index
    %11 = vector.load %arg4[%c0_5, %c0_6] : memref<6x1xf32, #tpu.memory_space<vmem>>, vector<6x1xf32>
    %12 = vector.broadcast %11 : vector<6x1xf32> to vector<6x256xf32>
    %13 = arith.addf %10, %12 : vector<6x256xf32>
    %c0_7 = arith.constant 0 : index
    %c0_8 = arith.constant 0 : index
    %14 = vector.load %arg5[%c0_7, %c0_8] : memref<6x256xf32, #tpu.memory_space<vmem>>, vector<6x256xf32>
    tpu.vector_store %arg5[%c0_7, %c0_8], %13 {strides = array<i32>} : memref<6x256xf32, #tpu.memory_space<vmem>>, vector<6x256xf32>,
    return
  }
  func.func @transform_0(%arg0: i32, %arg1: i32) -> (i32, i32) {
    %c0_i32 = arith.constant 0 : i32
    return %arg0, %arg1 : i32, i32
  }
  func.func @transform_1(%arg0: i32, %arg1: i32) -> (i32, i32) {
    %c0_i32 = arith.constant 0 : i32
    %c0_i32_0 = arith.constant 0 : i32
    return %arg0, %c0_i32 : i32, i32
  }
  func.func @transform_2(%arg0: i32, %arg1: i32) -> (i32, i32) {
    %c0_i32 = arith.constant 0 : i32
    %c0_i32_0 = arith.constant 0 : i32
    return %arg0, %c0_i32 : i32, i32
  }
  func.func @transform_3(%arg0: i32, %arg1: i32) -> (i32, i32) {
    %c0_i32 = arith.constant 0 : i32
    return %arg0, %arg1 : i32, i32
  }
}

</mosaic_0001>

<llo_original>
// kernel: tpu_custom_call.1
$region0: #{tpu_custom_call.1}
  #allocation0 [shape = 'u32[]', space=smem, size = 0x4, offset = 0x4, fixed_abs, tag = 'smem constant byte address 0x4 - core index']
  #allocation1 [shape = 'u32[144,128]{1,0:T(1,128)}', space=vmem, size = 0x12000, scoped, tag = 'internal scratch']
  %s0 = inlined_call_operand.vmem [shape: f32[6,256], index: 0, kind: input, shape index: {}]
  %s1 = inlined_call_operand.vmem [shape: f32[6,1], index: 1, kind: input, shape index: {}]
  %s2 = inlined_call_operand.vmem [shape: f32[6,1], index: 2, kind: input, shape index: {}]
  %s3 = inlined_call_operand.hbm [shape: f32[6,256], index: 3, kind: output, shape index: {}]
  %s4 = sld [smem:[#allocation0]]
  $region22: #{tpu_custom_call.1} parent=0
    _
  %s6 = ssub.s32 1, %s4
  %s7 = scalar_select 0, %s6, %s4
  $region1: #{tpu_custom_call.1} parent=0
    #allocation2 [shape = 'u8[8192]{0}', space=vmem, size = 0x2000, scoped, tag = 'output window, operand 0, single buffered']
    #allocation3 [shape = 's32[1]{0}', space=sflag, size = 0x4, scoped, tag = 'scoped memory for tpu_custom_call.1']
    %8 = vsyncpa [#allocation3], 0
    // Predicated region
    $region2: #{tpu_custom_call.1} parent=1 // pred_check
      _
    $region3: #{tpu_custom_call.1} parent=1 // pred_check_branch
      %10 = sbr.rel (0) target = $region5
    $region4: #{tpu_custom_call.1} parent=1 // pred_region
      _
    $region5: #{tpu_custom_call.1} parent=1 // pred_fallthru
      _
    // Predicated region
    $region6: #{tpu_custom_call.1} parent=1 // pred_check
      _
    $region7: #{tpu_custom_call.1} parent=1 // pred_check_branch
      %12 = sbr.rel (0) target = $region9
    $region8: #{tpu_custom_call.1} parent=1 // pred_region
      _
    $region9: #{tpu_custom_call.1} parent=1 // pred_fallthru
      _
    // Predicated region
    $region10: #{tpu_custom_call.1} parent=1 // pred_check
      _
    $region11: #{tpu_custom_call.1} parent=1 // pred_check_branch
      %14 = sbr.rel (0) target = $region13
    $region12: #{tpu_custom_call.1} parent=1 // pred_region
      _
    $region13: #{tpu_custom_call.1} parent=1 // pred_fallthru
      _
    %v15 = vld [vmem:[%s0] sm:$0x3f]
    %v16 = vld [vmem:[%s0 + $0x8] sm:$0x3f]
    %v17 = vmul.f32 %v15, 255.0
    %v18 = vmul.f32 %v16, 255.0
    %v19 = vround.ne.pseudo %v17
    %v20 = vround.ne.pseudo %v18
    %v21 = vmax.f32 %v19, 0.0
    %v22 = vmax.f32 %v20, 0.0
    %v23 = vmin.f32 %v21, 255.0
    %v24 = vmin.f32 %v22, 255.0
    %v25 = vld [vmem:[%s1] sm:$0x3f]
    %27 = vset.pattern.permute.xlu0 0
    %28 = vperm.xlu0 %27, %v25
    %v29 = vpop.permute.xlu0 %28
    %v31 = vmul.f32 %v23, %v29
    %v32 = vmul.f32 %v24, %v29
    %v33 = vld [vmem:[%s2] sm:$0x3f]
    %35 = vset.pattern.permute.xlu0 0
    %36 = vperm.xlu0 %35, %v33
    %v37 = vpop.permute.xlu0 %36
    %v39 = vadd.f32 %v31, %v37
    %v40 = vadd.f32 %v32, %v37
    %41 = vst [vmem:[#allocation2] sm:$0x3f] %v39
    %42 = vst [vmem:[#allocation2 + $0x8] sm:$0x3f] %v40
    // Predicated region
    $region14: #{tpu_custom_call.1} parent=1 // pred_check
      _
    $region15: #{tpu_custom_call.1} parent=1 // pred_check_branch
      %44 = sbr.rel (0) target = $region17
    $region16: #{tpu_custom_call.1} parent=1 // pred_region
      %s46 = ssub.s32 256, 256
      %47 = vsyncadd [#allocation3], %s46
      %s49 = sshll.u32 [#allocation2], 4
      %s50 = int_to_ptr.vmem [resolvable:$true] %s49
      %52 = dma.vmem_to_hbm [thread:$0]  %s50, 256, %s3, [#allocation3]
    $region17: #{tpu_custom_call.1} parent=1 // pred_fallthru
      _
    // Predicated region
    $region18: #{tpu_custom_call.1} parent=1 // pred_check
      _
    $region19: #{tpu_custom_call.1} parent=1 // pred_check_branch
      %54 = sbr.rel (0) target = $region21
    $region20: #{tpu_custom_call.1} parent=1 // pred_region
      %55 = dma.done [#allocation3], 256
    $region21: #{tpu_custom_call.1} parent=1 // pred_fallthru
      _
    %56 = vsyncpa [#allocation3], 1

</llo_original>
